<compile_context>
chip_gen: v5e
topology: v5e:2x2
jax: 0.10.0
libtpu: 0.0.40
codegen_flags: <defaults>
</compile_context>

<pallas_src>
import jax
import jax.numpy as jnp
from jax.experimental import pallas as pl
from jax.experimental.pallas import tpu as pltpu

# ---- model hyper-parameters (from tagger1.py) --------------------------------
CONTEXT_SIZE = 5
EMBEDDING_DIM = 50
HIDDEN_DIM = 32          # hidden_dim (free parameter in the original script)
VOCAB_SIZE = 100         # len(ut.W2I) — synthetic
NUM_TAGS = 10            # len(ut.T2I) — synthetic
IN_FEATURES = CONTEXT_SIZE * EMBEDDING_DIM  # 250

# ---- lane-friendly padded sizes ----------------------------------------------
VOCAB_PAD = 128                       # per-context one-hot width
K_FUSED = CONTEXT_SIZE * VOCAB_PAD    # 640: single MXU contraction depth
HIDDEN_PAD = 128                      # hidden 32 -> 128 (zero-padded)
TAGS_PAD = 128                        # tags 10 -> 128 (padded logits -> -1e30 via b2)

DEFAULT_TILE_B = 2048                 # batch tile (~12 MiB VMEM incl. temporaries)
MIN_SPLIT_B = 512                     # split into >=2 tiles above this (v7x megacore)
NEG_INF = -1e30


def _round_up(x, m):
    return (x + m - 1) // m * m


def _plan_batch(batch, tile_b):
    """Pick (tile_rows, padded_batch, num_tiles) minimizing padding and giving
    v7x's two TensorCores at least two parallel tiles for non-tiny batches."""
    batch = max(int(batch), 1)
    n_tiles = max(-(-batch // tile_b), 1)
    if batch >= MIN_SPLIT_B and n_tiles < 2:
        n_tiles = 2
    tb = _round_up(-(-batch // n_tiles), 8)
    b_pad = _round_up(batch, tb)
    return tb, b_pad, b_pad // tb


# ---- Pallas kernel: fused (embedding@W1)-lookup + tanh + Linear2 + log_softmax
def tagger_kernel(ids_ref, m_ref, b1_ref, w2_ref, b2_ref, o_ref):
    # ids: (tb, 5) i32        | m : (640, 128) bf16 (emb folded into W1, per ctx)
    # b1 : (1, 128) f32       | w2: (128, 128) bf16 | b2: (1, 128) f32
    # out: (tb, 128) f32
    ids = ids_ref[...]
    tb = ids.shape[0]

    # Concatenated one-hot (tb, 640): five lane-aligned (tb, 128) compares.
    vocab_iota = jax.lax.broadcasted_iota(jnp.int32, (tb, VOCAB_PAD), 1)
    onehot = jnp.concatenate(
        [(ids[:, c:c + 1] == vocab_iota).astype(jnp.bfloat16)
         for c in range(CONTEXT_SIZE)],
        axis=1)

    # Single K=640 bf16 matmul replaces gather + Linear1 (f32 accumulation).
    acc = jnp.dot(onehot, m_ref[...], preferred_element_type=jnp.float32)
    h = jnp.tanh(acc + b1_ref[...])                 # padded cols -> tanh(0)=0

    # Linear2 in bf16 on the MXU, f32 accumulation / bias / softmax.
    logits = jnp.dot(h.astype(jnp.bfloat16), w2_ref[...],
                     preferred_element_type=jnp.float32) + b2_ref[...]

    # numerically-stable log_softmax over the (padded) class dim
    mx = jnp.max(logits, axis=-1, keepdims=True)
    shifted = logits - mx
    lse = jnp.log(jnp.sum(jnp.exp(shifted), axis=-1, keepdims=True))
    o_ref[...] = shifted - lse


# ---- wrapper ------------------------------------------------------------------
def net_forward(inputs, emb_table, w1, b1, w2, b2, *, tile_b=DEFAULT_TILE_B):
    """inputs: (B, CONTEXT_SIZE) int token ids.
    emb_table: (VOCAB, 50) f32.  w1: (250, H), b1: (H,), w2: (H, T), b2: (T,)
    (weights stored pre-transposed: x @ W + b == PyTorch x @ W.T + b)."""
    B = inputs.shape[0]
    tb, b_pad, n_tiles = _plan_batch(B, tile_b)

    ids = inputs.astype(jnp.int32)
    if b_pad != B:
        ids = jnp.pad(ids, ((0, b_pad - B), (0, 0)))

    # ---- fold embedding into W1 + pad params (cheap; traced once under jit) ---
    w1_r = w1.reshape(CONTEXT_SIZE, EMBEDDING_DIM, HIDDEN_DIM)
    m_f32 = jnp.einsum('vd,cdh->cvh', emb_table, w1_r)        # (5, 100, 32) f32
    m_pad = jnp.zeros((CONTEXT_SIZE, VOCAB_PAD, HIDDEN_PAD), jnp.float32)
    m_pad = m_pad.at[:, :VOCAB_SIZE, :HIDDEN_DIM].set(m_f32)
    m_fused = m_pad.reshape(K_FUSED, HIDDEN_PAD).astype(jnp.bfloat16)

    b1_p = jnp.zeros((1, HIDDEN_PAD), jnp.float32).at[0, :HIDDEN_DIM].set(
        b1.reshape(-1))
    w2_p = jnp.zeros((HIDDEN_PAD, TAGS_PAD), jnp.float32).at[
        :HIDDEN_DIM, :NUM_TAGS].set(w2).astype(jnp.bfloat16)
    b2_p = jnp.full((1, TAGS_PAD), NEG_INF, jnp.float32).at[0, :NUM_TAGS].set(
        b2.reshape(-1))

    out = pl.pallas_call(
        tagger_kernel,
        out_shape=jax.ShapeDtypeStruct((b_pad, TAGS_PAD), jnp.float32),
        grid=(n_tiles,),
        in_specs=[
            pl.BlockSpec((tb, CONTEXT_SIZE), lambda i: (i, 0)),          # ids
            pl.BlockSpec((K_FUSED, HIDDEN_PAD), lambda i: (0, 0)),       # emb@W1 (resident)
            pl.BlockSpec((1, HIDDEN_PAD), lambda i: (0, 0)),             # b1 (resident)
            pl.BlockSpec((HIDDEN_PAD, TAGS_PAD), lambda i: (0, 0)),      # w2 (resident)
            pl.BlockSpec((1, TAGS_PAD), lambda i: (0, 0)),               # b2 (resident)
        ],
        out_specs=pl.BlockSpec((tb, TAGS_PAD), lambda i: (i, 0)),
        compiler_params=pltpu.CompilerParams(
            dimension_semantics=("parallel",)),
    )(ids, m_fused, b1_p, w2_p, b2_p)

    return out[:B, :NUM_TAGS]


# ---- deterministic parameter init ---------------------------------------------
def init_params(key):
    k_emb, k_w1, k_b1, k_w2, k_b2 = jax.random.split(key, 5)
    emb_table = jax.random.normal(k_emb, (VOCAB_SIZE, EMBEDDING_DIM), jnp.float32)
    lim1 = 1.0 / (IN_FEATURES ** 0.5)
    w1 = jax.random.uniform(k_w1, (IN_FEATURES, HIDDEN_DIM), jnp.float32, -lim1, lim1)
    b1 = jax.random.uniform(k_b1, (HIDDEN_DIM,), jnp.float32, -lim1, lim1)
    lim2 = 1.0 / (HIDDEN_DIM ** 0.5)
    w2 = jax.random.uniform(k_w2, (HIDDEN_DIM, NUM_TAGS), jnp.float32, -lim2, lim2)
    b2 = jax.random.uniform(k_b2, (NUM_TAGS,), jnp.float32, -lim2, lim2)
    return emb_table, w1, b1, w2, b2


# ---- pure-JAX reference (applies the SAME fold + bf16 rounding as the kernel) --
def reference_forward(inputs, emb_table, w1, b1, w2, b2):
    w1_r = w1.reshape(CONTEXT_SIZE, EMBEDDING_DIM, HIDDEN_DIM)
    m = jnp.einsum('vd,cdh->cvh', emb_table, w1_r)            # f32 fold
    m_q = m.astype(jnp.bfloat16).astype(jnp.float32)          # rounded once
    acc = sum(jnp.take(m_q[c], inputs[:, c], axis=0) for c in range(CONTEXT_SIZE))
    h = jnp.tanh(acc + b1)
    h_q = h.astype(jnp.bfloat16).astype(jnp.float32)
    w2_q = w2.astype(jnp.bfloat16).astype(jnp.float32)
    logits = h_q @ w2_q + b2
    return jax.nn.log_softmax(logits, axis=1)


if __name__ == "__main__":
    key = jax.random.PRNGKey(0)
    k_params, k_inp = jax.random.split(key)
    params = init_params(k_params)

    B = 8
    inputs = jax.random.randint(k_inp, (B, CONTEXT_SIZE), 0, VOCAB_SIZE, jnp.int32)

    fwd = jax.jit(net_forward)
    out = jax.block_until_ready(fwd(inputs, *params))

    # sanity: shape + rows sum (in prob space) to ~1
    assert out.shape == (B, NUM_TAGS)
    assert bool(jnp.allclose(jnp.sum(jnp.exp(out), axis=1), 1.0, atol=1e-4))

    # correctness vs pure-JAX reference (same fold / bf16 quantization)
    ref = reference_forward(inputs, *params)
    max_err = float(jnp.max(jnp.abs(out - ref)))
    assert max_err < 2e-3, f"max abs err {max_err}"

    print("KERNEL_OK")
</pallas_src>

<mosaic_0001>
module attributes {stable_mosaic.version = 11 : i64} {
  func.func @tagger_kernel(%arg0: i32, %arg1: memref<8x5xi32, #tpu.memory_space<vmem>>, %arg2: memref<640x128xbf16, #tpu.memory_space<vmem>>, %arg3: memref<1x128xf32, #tpu.memory_space<vmem>>, %arg4: memref<128x128xbf16, #tpu.memory_space<vmem>>, %arg5: memref<1x128xf32, #tpu.memory_space<vmem>>, %arg6: memref<8x128xf32, #tpu.memory_space<vmem>>) attributes {dimension_semantics = [#tpu.dimension_semantics<parallel>], iteration_bounds = array<i64: 1>, scalar_prefetch = 0 : i64, scratch_operands = 0 : i64, tpu.core_type = #tpu.core_type<tc>, window_params = [{transform_indices = @transform_0, window_bounds = array<i64: 8, 5>}, {pipeline_mode = #tpu.pipeline_mode<synchronous>, transform_indices = @transform_1, window_bounds = array<i64: 640, 128>}, {pipeline_mode = #tpu.pipeline_mode<synchronous>, transform_indices = @transform_2, window_bounds = array<i64: 1, 128>}, {pipeline_mode = #tpu.pipeline_mode<synchronous>, transform_indices = @transform_3, window_bounds = array<i64: 128, 128>}, {pipeline_mode = #tpu.pipeline_mode<synchronous>, transform_indices = @transform_4, window_bounds = array<i64: 1, 128>}, {transform_indices = @transform_5, window_bounds = array<i64: 8, 128>}]} {
    %c0 = arith.constant 0 : index
    %c0_0 = arith.constant 0 : index
    %0 = vector.load %arg1[%c0, %c0_0] : memref<8x5xi32, #tpu.memory_space<vmem>>, vector<8x5xi32>
    %1 = tpu.iota {dimensions = array<i32: 1>} : vector<8x128xi32>
    %2 = vector.extract_strided_slice %0 {offsets = [0, 0], sizes = [8, 1], strides = [1, 1]} : vector<8x5xi32> to vector<8x1xi32>
    %3 = vector.broadcast %2 : vector<8x1xi32> to vector<8x128xi32>
    %4 = arith.cmpi eq, %3, %1 : vector<8x128xi32>
    %5 = arith.extui %4 : vector<8x128xi1> to vector<8x128xi32>
    %6 = arith.sitofp %5 : vector<8x128xi32> to vector<8x128xf32>
    %7 = arith.truncf %6 : vector<8x128xf32> to vector<8x128xbf16>
    %8 = vector.extract_strided_slice %0 {offsets = [0, 1], sizes = [8, 1], strides = [1, 1]} : vector<8x5xi32> to vector<8x1xi32>
    %9 = vector.broadcast %8 : vector<8x1xi32> to vector<8x128xi32>
    %10 = arith.cmpi eq, %9, %1 : vector<8x128xi32>
    %11 = arith.extui %10 : vector<8x128xi1> to vector<8x128xi32>
    %12 = arith.sitofp %11 : vector<8x128xi32> to vector<8x128xf32>
    %13 = arith.truncf %12 : vector<8x128xf32> to vector<8x128xbf16>
    %14 = vector.extract_strided_slice %0 {offsets = [0, 2], sizes = [8, 1], strides = [1, 1]} : vector<8x5xi32> to vector<8x1xi32>
    %15 = vector.broadcast %14 : vector<8x1xi32> to vector<8x128xi32>
    %16 = arith.cmpi eq, %15, %1 : vector<8x128xi32>
    %17 = arith.extui %16 : vector<8x128xi1> to vector<8x128xi32>
    %18 = arith.sitofp %17 : vector<8x128xi32> to vector<8x128xf32>
    %19 = arith.truncf %18 : vector<8x128xf32> to vector<8x128xbf16>
    %20 = vector.extract_strided_slice %0 {offsets = [0, 3], sizes = [8, 1], strides = [1, 1]} : vector<8x5xi32> to vector<8x1xi32>
    %21 = vector.broadcast %20 : vector<8x1xi32> to vector<8x128xi32>
    %22 = arith.cmpi eq, %21, %1 : vector<8x128xi32>
    %23 = arith.extui %22 : vector<8x128xi1> to vector<8x128xi32>
    %24 = arith.sitofp %23 : vector<8x128xi32> to vector<8x128xf32>
    %25 = arith.truncf %24 : vector<8x128xf32> to vector<8x128xbf16>
    %26 = vector.extract_strided_slice %0 {offsets = [0, 4], sizes = [8, 1], strides = [1, 1]} : vector<8x5xi32> to vector<8x1xi32>
    %27 = vector.broadcast %26 : vector<8x1xi32> to vector<8x128xi32>
    %28 = arith.cmpi eq, %27, %1 : vector<8x128xi32>
    %29 = arith.extui %28 : vector<8x128xi1> to vector<8x128xi32>
    %30 = arith.sitofp %29 : vector<8x128xi32> to vector<8x128xf32>
    %31 = arith.truncf %30 : vector<8x128xf32> to vector<8x128xbf16>
    %32 = tpu.concatenate %7, %13, %19, %25, %31 in 1 : vector<8x128xbf16>, vector<8x128xbf16>, vector<8x128xbf16>, vector<8x128xbf16>, vector<8x128xbf16> -> vector<8x640xbf16>
    %c0_1 = arith.constant 0 : index
    %c0_2 = arith.constant 0 : index
    %33 = vector.load %arg2[%c0_1, %c0_2] : memref<640x128xbf16, #tpu.memory_space<vmem>>, vector<640x128xbf16>
    %cst = arith.constant dense<0.000000e+00> : vector<8x128xf32>
    %34 = tpu.matmul %32, %33, %cst {dimension_numbers = #tpu.dot_dimension_numbers<[1], [0], [0], [1], [0, 0, 1, 1], [], []>} : vector<8x640xbf16>, vector<640x128xbf16>, vector<8x128xf32> -> vector<8x128xf32>
    %c0_3 = arith.constant 0 : index
    %c0_4 = arith.constant 0 : index
    %35 = vector.load %arg3[%c0_3, %c0_4] : memref<1x128xf32, #tpu.memory_space<vmem>>, vector<1x128xf32>
    %36 = vector.broadcast %35 : vector<1x128xf32> to vector<8x128xf32>
    %37 = arith.addf %34, %36 : vector<8x128xf32>
    %38 = math.tanh %37 : vector<8x128xf32>
    %39 = arith.truncf %38 : vector<8x128xf32> to vector<8x128xbf16>
    %c0_5 = arith.constant 0 : index
    %c0_6 = arith.constant 0 : index
    %40 = vector.load %arg4[%c0_5, %c0_6] : memref<128x128xbf16, #tpu.memory_space<vmem>>, vector<128x128xbf16>
    %cst_7 = arith.constant dense<0.000000e+00> : vector<8x128xf32>
    %41 = tpu.matmul %39, %40, %cst_7 {dimension_numbers = #tpu.dot_dimension_numbers<[1], [0], [0], [1], [0, 0, 1, 1], [], []>} : vector<8x128xbf16>, vector<128x128xbf16>, vector<8x128xf32> -> vector<8x128xf32>
    %c0_8 = arith.constant 0 : index
    %c0_9 = arith.constant 0 : index
    %42 = vector.load %arg5[%c0_8, %c0_9] : memref<1x128xf32, #tpu.memory_space<vmem>>, vector<1x128xf32>
    %43 = vector.broadcast %42 : vector<1x128xf32> to vector<8x128xf32>
    %44 = arith.addf %41, %43 : vector<8x128xf32>
    %cst_10 = arith.constant dense<0xFF800000> : vector<8xf32>
    %45 = vector.multi_reduction <maximumf>, %44, %cst_10 [1] : vector<8x128xf32> to vector<8xf32>
    %46 = vector.shape_cast %45 : vector<8xf32> to vector<8x1xf32>
    %47 = vector.broadcast %46 : vector<8x1xf32> to vector<8x128xf32>
    %48 = arith.subf %44, %47 : vector<8x128xf32>
    %49 = math.exp %48 : vector<8x128xf32>
    %cst_11 = arith.constant dense<0.000000e+00> : vector<8xf32>
    %50 = vector.multi_reduction <add>, %49, %cst_11 [1] : vector<8x128xf32> to vector<8xf32>
    %51 = vector.shape_cast %50 : vector<8xf32> to vector<8x1xf32>
    %52 = math.log %51 : vector<8x1xf32>
    %53 = vector.broadcast %52 : vector<8x1xf32> to vector<8x128xf32>
    %54 = arith.subf %48, %53 : vector<8x128xf32>
    %c0_12 = arith.constant 0 : index
    %c0_13 = arith.constant 0 : index
    %55 = vector.load %arg6[%c0_12, %c0_13] : memref<8x128xf32, #tpu.memory_space<vmem>>, vector<8x128xf32>
    tpu.vector_store %arg6[%c0_12, %c0_13], %54 {strides = array<i32>} : memref<8x128xf32, #tpu.memory_space<vmem>>, vector<8x128xf32>,
    return
  }
  func.func @transform_0(%arg0: i32) -> (i32, i32) {
    %c0_i32 = arith.constant 0 : i32
    %c0_i32_0 = arith.constant 0 : i32
    return %arg0, %c0_i32 : i32, i32
  }
  func.func @transform_1(%arg0: i32) -> (i32, i32) {
    %c0_i32 = arith.constant 0 : i32
    %c0_i32_0 = arith.constant 0 : i32
    %c0_i32_1 = arith.constant 0 : i32
    return %c0_i32, %c0_i32_0 : i32, i32
  }
  func.func @transform_2(%arg0: i32) -> (i32, i32) {
    %c0_i32 = arith.constant 0 : i32
    %c0_i32_0 = arith.constant 0 : i32
    %c0_i32_1 = arith.constant 0 : i32
    return %c0_i32, %c0_i32_0 : i32, i32
  }
  func.func @transform_3(%arg0: i32) -> (i32, i32) {
    %c0_i32 = arith.constant 0 : i32
    %c0_i32_0 = arith.constant 0 : i32
    %c0_i32_1 = arith.constant 0 : i32
    return %c0_i32, %c0_i32_0 : i32, i32
  }
  func.func @transform_4(%arg0: i32) -> (i32, i32) {
    %c0_i32 = arith.constant 0 : i32
    %c0_i32_0 = arith.constant 0 : i32
    %c0_i32_1 = arith.constant 0 : i32
    return %c0_i32, %c0_i32_0 : i32, i32
  }
  func.func @transform_5(%arg0: i32) -> (i32, i32) {
    %c0_i32 = arith.constant 0 : i32
    %c0_i32_0 = arith.constant 0 : i32
    return %arg0, %c0_i32 : i32, i32
  }
}

</mosaic_0001>

<llo_original>
// kernel: net_forward.1
$region0: #{net_forward.1}
  #allocation0 [shape = 'u32[]', space=smem, size = 0x4, offset = 0x4, fixed_abs, tag = 'smem constant byte address 0x4 - core index']
  #allocation1 [shape = 'u32[72,128]{1,0:T(1,128)}', space=vmem, size = 0x9000, scoped, tag = 'internal scratch']
  %s0 = inlined_call_operand.vmem [shape: s32[8,5], index: 0, kind: input, shape index: {}]
  %s1 = inlined_call_operand.vmem [shape: bf16[640,128], index: 1, kind: input, shape index: {}]
  %s2 = inlined_call_operand.vmem [shape: f32[1,128], index: 2, kind: input, shape index: {}]
  %s3 = inlined_call_operand.vmem [shape: bf16[128,128], index: 3, kind: input, shape index: {}]
  %s4 = inlined_call_operand.vmem [shape: f32[1,128], index: 4, kind: input, shape index: {}]
  %s5 = inlined_call_operand.hbm [shape: f32[8,128], index: 5, kind: output, shape index: {}]
  %s6 = sld [smem:[#allocation0]]
  $region30: #{net_forward.1} parent=0
    _
  %s8 = ssub.s32 1, %s6
  %s9 = scalar_select 0, %s8, %s6
  $region1: #{net_forward.1} parent=0
    #allocation2 [shape = 'u8[4096]{0}', space=vmem, size = 0x1000, scoped, tag = 'output window, operand 0, single buffered']
    #allocation3 [shape = 's32[1]{0}', space=sflag, size = 0x4, scoped, tag = 'scoped memory for net_forward.1']
    %10 = vsyncpa [#allocation3], 0
    // Predicated region
    $region2: #{net_forward.1} parent=1 // pred_check
      _
    $region3: #{net_forward.1} parent=1 // pred_check_branch
      %12 = sbr.rel (0) target = $region5
    $region4: #{net_forward.1} parent=1 // pred_region
      _
    $region5: #{net_forward.1} parent=1 // pred_fallthru
      _
    // Predicated region
    $region6: #{net_forward.1} parent=1 // pred_check
      _
    $region7: #{net_forward.1} parent=1 // pred_check_branch
      %14 = sbr.rel (0) target = $region9
    $region8: #{net_forward.1} parent=1 // pred_region
      _
    $region9: #{net_forward.1} parent=1 // pred_fallthru
      _
    // Predicated region
    $region10: #{net_forward.1} parent=1 // pred_check
      _
    $region11: #{net_forward.1} parent=1 // pred_check_branch
      %16 = sbr.rel (0) target = $region13
    $region12: #{net_forward.1} parent=1 // pred_region
      _
    $region13: #{net_forward.1} parent=1 // pred_fallthru
      _
    // Predicated region
    $region14: #{net_forward.1} parent=1 // pred_check
      _
    $region15: #{net_forward.1} parent=1 // pred_check_branch
      %18 = sbr.rel (0) target = $region17
    $region16: #{net_forward.1} parent=1 // pred_region
      _
    $region17: #{net_forward.1} parent=1 // pred_fallthru
      _
    // Predicated region
    $region18: #{net_forward.1} parent=1 // pred_check
      _
    $region19: #{net_forward.1} parent=1 // pred_check_branch
      %20 = sbr.rel (0) target = $region21
    $region20: #{net_forward.1} parent=1 // pred_region
      _
    $region21: #{net_forward.1} parent=1 // pred_fallthru
      _
    %v21 = vld [vmem:[%s0] sm:$0xff]
    %v22 = vlaneseq
    %v23 = vand.u32 %v22, 127
    %24 = vset.pattern.permute.xlu0 0
    %25 = vperm.xlu0 %24, %v21
    %v26 = vpop.permute.xlu0 %25
    %vm27 = vcmp.eq.s32.totalorder %v26, %v23
    %v28 = vsel %vm27, 1, 0
    %v29 = vcvt.s32.f32 %v28
    %v30 = vpack.c.bf16 %v29, %v29
    %31 = vset.pattern.permute.xlu0 1
    %32 = vperm.xlu0 %31, %v21
    %v33 = vpop.permute.xlu0 %32
    %vm34 = vcmp.eq.s32.totalorder %v33, %v23
    %v35 = vsel %vm34, 1, 0
    %v36 = vcvt.s32.f32 %v35
    %v37 = vpack.c.bf16 %v36, %v36
    %38 = vset.pattern.permute.xlu0 2
    %39 = vperm.xlu0 %38, %v21
    %v40 = vpop.permute.xlu0 %39
    %vm41 = vcmp.eq.s32.totalorder %v40, %v23
    %v42 = vsel %vm41, 1, 0
    %v43 = vcvt.s32.f32 %v42
    %v44 = vpack.c.bf16 %v43, %v43
    %45 = vset.pattern.permute.xlu0 3
    %46 = vperm.xlu0 %45, %v21
    %v47 = vpop.permute.xlu0 %46
    %vm48 = vcmp.eq.s32.totalorder %v47, %v23
    %v49 = vsel %vm48, 1, 0
    %v50 = vcvt.s32.f32 %v49
    %v51 = vpack.c.bf16 %v50, %v50
    %52 = vset.pattern.permute.xlu0 4
    %53 = vperm.xlu0 %52, %v21
    %v54 = vpop.permute.xlu0 %53
    %vm55 = vcmp.eq.s32.totalorder %v54, %v23
    %v56 = vsel %vm55, 1, 0
    %v57 = vcvt.s32.f32 %v56
    %v58 = vpack.c.bf16 %v57, %v57
    %v59 = vld [vmem:[%s1] sm:$0xf]
    %v60 = vld [vmem:[%s1 + $0x4] sm:$0xf]
    %v61 = vld [vmem:[%s1 + $0x8] sm:$0xf]
    %v62 = vld [vmem:[%s1 + $0xc] sm:$0xf]
    %v63 = vld [vmem:[%s1 + $0x10] sm:$0xf]
    %v64 = vld [vmem:[%s1 + $0x14] sm:$0xf]
    %v65 = vld [vmem:[%s1 + $0x18] sm:$0xf]
    %v66 = vld [vmem:[%s1 + $0x1c] sm:$0xf]
    %v67 = vld [vmem:[%s1 + $0x20] sm:$0xf]
    %v68 = vld [vmem:[%s1 + $0x24] sm:$0xf]
    %v69 = vld [vmem:[%s1 + $0x28] sm:$0xf]
    %v70 = vld [vmem:[%s1 + $0x2c] sm:$0xf]
    %v71 = vld [vmem:[%s1 + $0x30] sm:$0xf]
    %v72 = vld [vmem:[%s1 + $0x34] sm:$0xf]
    %v73 = vld [vmem:[%s1 + $0x38] sm:$0xf]
    %v74 = vld [vmem:[%s1 + $0x3c] sm:$0xf]
    %v75 = vld [vmem:[%s1 + $0x40] sm:$0xf]
    %v76 = vld [vmem:[%s1 + $0x44] sm:$0xf]
    %v77 = vld [vmem:[%s1 + $0x48] sm:$0xf]
    %v78 = vld [vmem:[%s1 + $0x4c] sm:$0xf]
    %v79 = vld [vmem:[%s1 + $0x50] sm:$0xf]
    %v80 = vld [vmem:[%s1 + $0x54] sm:$0xf]
    %v81 = vld [vmem:[%s1 + $0x58] sm:$0xf]
    %v82 = vld [vmem:[%s1 + $0x5c] sm:$0xf]
    %v83 = vld [vmem:[%s1 + $0x60] sm:$0xf]
    %v84 = vld [vmem:[%s1 + $0x64] sm:$0xf]
    %v85 = vld [vmem:[%s1 + $0x68] sm:$0xf]
    %v86 = vld [vmem:[%s1 + $0x6c] sm:$0xf]
    %v87 = vld [vmem:[%s1 + $0x70] sm:$0xf]
    %v88 = vld [vmem:[%s1 + $0x74] sm:$0xf]
    %v89 = vld [vmem:[%s1 + $0x78] sm:$0xf]
    %v90 = vld [vmem:[%s1 + $0x7c] sm:$0xf]
    %v91 = vld [vmem:[%s1 + $0x80] sm:$0xf]
    %v92 = vld [vmem:[%s1 + $0x84] sm:$0xf]
    %v93 = vld [vmem:[%s1 + $0x88] sm:$0xf]
    %v94 = vld [vmem:[%s1 + $0x8c] sm:$0xf]
    %v95 = vld [vmem:[%s1 + $0x90] sm:$0xf]
    %v96 = vld [vmem:[%s1 + $0x94] sm:$0xf]
    %v97 = vld [vmem:[%s1 + $0x98] sm:$0xf]
    %v98 = vld [vmem:[%s1 + $0x9c] sm:$0xf]
    %v99 = vld [vmem:[%s1 + $0xa0] sm:$0xf]
    %v100 = vld [vmem:[%s1 + $0xa4] sm:$0xf]
    %v101 = vld [vmem:[%s1 + $0xa8] sm:$0xf]
    %v102 = vld [vmem:[%s1 + $0xac] sm:$0xf]
    %v103 = vld [vmem:[%s1 + $0xb0] sm:$0xf]
    %v104 = vld [vmem:[%s1 + $0xb4] sm:$0xf]
    %v105 = vld [vmem:[%s1 + $0xb8] sm:$0xf]
    %v106 = vld [vmem:[%s1 + $0xbc] sm:$0xf]
    %v107 = vld [vmem:[%s1 + $0xc0] sm:$0xf]
    %v108 = vld [vmem:[%s1 + $0xc4] sm:$0xf]
    %v109 = vld [vmem:[%s1 + $0xc8] sm:$0xf]
    %v110 = vld [vmem:[%s1 + $0xcc] sm:$0xf]
    %v111 = vld [vmem:[%s1 + $0xd0] sm:$0xf]
    %v112 = vld [vmem:[%s1 + $0xd4] sm:$0xf]
    %v113 = vld [vmem:[%s1 + $0xd8] sm:$0xf]
    %v114 = vld [vmem:[%s1 + $0xdc] sm:$0xf]
    %v115 = vld [vmem:[%s1 + $0xe0] sm:$0xf]
    %v116 = vld [vmem:[%s1 + $0xe4] sm:$0xf]
    %v117 = vld [vmem:[%s1 + $0xe8] sm:$0xf]
    %v118 = vld [vmem:[%s1 + $0xec] sm:$0xf]
    %v119 = vld [vmem:[%s1 + $0xf0] sm:$0xf]
    %v120 = vld [vmem:[%s1 + $0xf4] sm:$0xf]
    %v121 = vld [vmem:[%s1 + $0xf8] sm:$0xf]
    %v122 = vld [vmem:[%s1 + $0xfc] sm:$0xf]
    %v123 = vld [vmem:[%s1 + $0x100] sm:$0xf]
    %v124 = vld [vmem:[%s1 + $0x104] sm:$0xf]
    %v125 = vld [vmem:[%s1 + $0x108] sm:$0xf]
    %v126 = vld [vmem:[%s1 + $0x10c] sm:$0xf]
    %v127 = vld [vmem:[%s1 + $0x110] sm:$0xf]
    %v128 = vld [vmem:[%s1 + $0x114] sm:$0xf]
    %v129 = vld [vmem:[%s1 + $0x118] sm:$0xf]
    %v130 = vld [vmem:[%s1 + $0x11c] sm:$0xf]
    %v131 = vld [vmem:[%s1 + $0x120] sm:$0xf]
    %v132 = vld [vmem:[%s1 + $0x124] sm:$0xf]
    %v133 = vld [vmem:[%s1 + $0x128] sm:$0xf]
    %v134 = vld [vmem:[%s1 + $0x12c] sm:$0xf]
    %v135 = vld [vmem:[%s1 + $0x130] sm:$0xf]
    %v136 = vld [vmem:[%s1 + $0x134] sm:$0xf]
    %v137 = vld [vmem:[%s1 + $0x138] sm:$0xf]
    %v138 = vld [vmem:[%s1 + $0x13c] sm:$0xf]
    %v139 = vld [vmem:[%s2] sm:$0x1]
    %v141 = vperm.slane %v139, 0
    %v223 = vunpack.c.l.b16 %v59
    %v224 = vunpack.c.l.b16 %v60
    %v225 = vunpack.c.l.b16 %v61
    %v226 = vunpack.c.l.b16 %v62
    %v227 = vunpack.c.l.b16 %v63
    %v228 = vunpack.c.l.b16 %v64
    %v229 = vunpack.c.l.b16 %v65
    %v230 = vunpack.c.l.b16 %v66
    %v231 = vunpack.c.l.b16 %v67
    %v232 = vunpack.c.l.b16 %v68
    %v233 = vunpack.c.l.b16 %v69
    %v234 = vunpack.c.l.b16 %v70
    %v235 = vunpack.c.l.b16 %v71
    %v236 = vunpack.c.l.b16 %v72
    %v237 = vunpack.c.l.b16 %v73
    %v238 = vunpack.c.l.b16 %v74
    %v239 = vunpack.c.l.b16 %v75
    %v240 = vunpack.c.l.b16 %v76
    %v241 = vunpack.c.l.b16 %v77
    %v242 = vunpack.c.l.b16 %v78
    %v243 = vunpack.c.l.b16 %v79
    %v244 = vunpack.c.l.b16 %v80
    %v245 = vunpack.c.l.b16 %v81
    %v246 = vunpack.c.l.b16 %v82
    %v247 = vunpack.c.l.b16 %v83
    %v248 = vunpack.c.l.b16 %v84
    %v249 = vunpack.c.l.b16 %v85
    %v250 = vunpack.c.l.b16 %v86
    %v251 = vunpack.c.l.b16 %v87
    %v252 = vunpack.c.l.b16 %v88
    %v253 = vunpack.c.l.b16 %v89
    %v254 = vunpack.c.l.b16 %v90
    %v255 = vunpack.c.l.b16 %v91
    %v256 = vunpack.c.l.b16 %v92
    %v257 = vunpack.c.l.b16 %v93
    %v258 = vunpack.c.l.b16 %v94
    %v259 = vunpack.c.l.b16 %v95
    %v260 = vunpack.c.l.b16 %v96
    %v261 = vunpack.c.l.b16 %v97
    %v262 = vunpack.c.l.b16 %v98
    %v263 = vunpack.c.l.b16 %v99
    %v264 = vunpack.c.l.b16 %v100
    %v265 = vunpack.c.l.b16 %v101
    %v266 = vunpack.c.l.b16 %v102
    %v267 = vunpack.c.l.b16 %v103
    %v268 = vunpack.c.l.b16 %v104
    %v269 = vunpack.c.l.b16 %v105
    %v270 = vunpack.c.l.b16 %v106
    %v271 = vunpack.c.l.b16 %v107
    %v272 = vunpack.c.l.b16 %v108
    %v273 = vunpack.c.l.b16 %v109
    %v274 = vunpack.c.l.b16 %v110
    %v275 = vunpack.c.l.b16 %v111
    %v276 = vunpack.c.l.b16 %v112
    %v277 = vunpack.c.l.b16 %v113
    %v278 = vunpack.c.l.b16 %v114
    %v279 = vunpack.c.l.b16 %v115
    %v280 = vunpack.c.l.b16 %v116
    %v281 = vunpack.c.l.b16 %v117
    %v282 = vunpack.c.l.b16 %v118
    %v283 = vunpack.c.l.b16 %v119
    %v284 = vunpack.c.l.b16 %v120
    %v285 = vunpack.c.l.b16 %v121
    %v286 = vunpack.c.l.b16 %v122
    %v287 = vunpack.c.l.b16 %v123
    %v288 = vunpack.c.l.b16 %v124
    %v289 = vunpack.c.l.b16 %v125
    %v290 = vunpack.c.l.b16 %v126
    %v291 = vunpack.c.l.b16 %v127
    %v292 = vunpack.c.l.b16 %v128
    %v293 = vunpack.c.l.b16 %v129
    %v294 = vunpack.c.l.b16 %v130
    %v295 = vunpack.c.l.b16 %v131
    %v296 = vunpack.c.l.b16 %v132
    %v297 = vunpack.c.l.b16 %v133
    %v298 = vunpack.c.l.b16 %v134
    %v299 = vunpack.c.l.b16 %v135
    %v300 = vunpack.c.l.b16 %v136
    %v301 = vunpack.c.l.b16 %v137
    %v302 = vunpack.c.l.b16 %v138
    %v303 = vpack.c.b16 %v224, %v223
    %v304 = vpack.c.b16 %v226, %v225
    %v305 = vpack.c.b16 %v228, %v227
    %v306 = vpack.c.b16 %v230, %v229
    %v307 = vpack.c.b16 %v232, %v231
    %v308 = vpack.c.b16 %v234, %v233
    %v309 = vpack.c.b16 %v236, %v235
    %v310 = vpack.c.b16 %v238, %v237
    %v311 = vpack.c.b16 %v240, %v239
    %v312 = vpack.c.b16 %v242, %v241
    %v313 = vpack.c.b16 %v244, %v243
    %v314 = vpack.c.b16 %v246, %v245
    %v315 = vpack.c.b16 %v248, %v247
    %v316 = vpack.c.b16 %v250, %v249
    %v317 = vpack.c.b16 %v252, %v251
    %v318 = vpack.c.b16 %v254, %v253
    %v319 = vpack.c.b16 %v256, %v255
    %v320 = vpack.c.b16 %v258, %v257
    %v321 = vpack.c.b16 %v260, %v259
    %v322 = vpack.c.b16 %v262, %v261
    %v323 = vpack.c.b16 %v264, %v263
    %v324 = vpack.c.b16 %v266, %v265
    %v325 = vpack.c.b16 %v268, %v267
    %v326 = vpack.c.b16 %v270, %v269
    %v327 = vpack.c.b16 %v272, %v271
    %v328 = vpack.c.b16 %v274, %v273
    %v329 = vpack.c.b16 %v276, %v275
    %v330 = vpack.c.b16 %v278, %v277
    %v331 = vpack.c.b16 %v280, %v279
    %v332 = vpack.c.b16 %v282, %v281
    %v333 = vpack.c.b16 %v284, %v283
    %v334 = vpack.c.b16 %v286, %v285
    %v335 = vpack.c.b16 %v288, %v287
    %v336 = vpack.c.b16 %v290, %v289
    %v337 = vpack.c.b16 %v292, %v291
    %v338 = vpack.c.b16 %v294, %v293
    %v339 = vpack.c.b16 %v296, %v295
    %v340 = vpack.c.b16 %v298, %v297
    %v341 = vpack.c.b16 %v300, %v299
    %v342 = vpack.c.b16 %v302, %v301
    %383 = vmatpush.bf16.msra.mxu0 %v310
    %384 = vmatpush.bf16.msra.mxu0 %v309
    %385 = vmatpush.bf16.msra.mxu0 %v308
    %386 = vmatpush.bf16.msra.mxu0 %v307
    %387 = vmatpush.bf16.msra.mxu0 %v306
    %388 = vmatpush.bf16.msra.mxu0 %v305
    %389 = vmatpush.bf16.msra.mxu0 %v304
    %390 = vmatpush.bf16.msra.mxu0 %v303
    %391 = vmatmul.bf16.gmra.mxu0 %v30
    %v392 = vpop.f32.mrf.mxu0
    %v393 = vadd.f32 %v141, %v392
    %v394 = vpop.f32.mrf.mxu0
    %395 = vdwg.mxu0
    %396 = vmatpush.bf16.msra.mxu0 %v318
    %397 = vmatpush.bf16.msra.mxu0 %v317
    %398 = vmatpush.bf16.msra.mxu0 %v316
    %399 = vmatpush.bf16.msra.mxu0 %v315
    %400 = vmatpush.bf16.msra.mxu0 %v314
    %401 = vmatpush.bf16.msra.mxu0 %v313
    %402 = vmatpush.bf16.msra.mxu0 %v312
    %403 = vmatpush.bf16.msra.mxu0 %v311
    %404 = vmatmul.bf16.gmra.mxu0 %v37
    %v405 = vpop.f32.mrf.mxu0
    %v406 = vadd.f32 %v393, %v405
    %v407 = vpop.f32.mrf.mxu0
    %408 = vdwg.mxu0
    %409 = vmatpush.bf16.msra.mxu0 %v326
    %410 = vmatpush.bf16.msra.mxu0 %v325
    %411 = vmatpush.bf16.msra.mxu0 %v324
    %412 = vmatpush.bf16.msra.mxu0 %v323
    %413 = vmatpush.bf16.msra.mxu0 %v322
    %414 = vmatpush.bf16.msra.mxu0 %v321
    %415 = vmatpush.bf16.msra.mxu0 %v320
    %416 = vmatpush.bf16.msra.mxu0 %v319
    %417 = vmatmul.bf16.gmra.mxu0 %v44
    %v418 = vpop.f32.mrf.mxu0
    %v419 = vadd.f32 %v406, %v418
    %v420 = vpop.f32.mrf.mxu0
    %421 = vdwg.mxu0
    %422 = vmatpush.bf16.msra.mxu0 %v334
    %423 = vmatpush.bf16.msra.mxu0 %v333
    %424 = vmatpush.bf16.msra.mxu0 %v332
    %425 = vmatpush.bf16.msra.mxu0 %v331
    %426 = vmatpush.bf16.msra.mxu0 %v330
    %427 = vmatpush.bf16.msra.mxu0 %v329
    %428 = vmatpush.bf16.msra.mxu0 %v328
    %429 = vmatpush.bf16.msra.mxu0 %v327
    %430 = vmatmul.bf16.gmra.mxu0 %v51
    %v431 = vpop.f32.mrf.mxu0
    %v432 = vadd.f32 %v419, %v431
    %v433 = vpop.f32.mrf.mxu0
    %434 = vdwg.mxu0
    %435 = vmatpush.bf16.msra.mxu0 %v342
    %436 = vmatpush.bf16.msra.mxu0 %v341
    %437 = vmatpush.bf16.msra.mxu0 %v340
    %438 = vmatpush.bf16.msra.mxu0 %v339
    %439 = vmatpush.bf16.msra.mxu0 %v338
    %440 = vmatpush.bf16.msra.mxu0 %v337
    %441 = vmatpush.bf16.msra.mxu0 %v336
    %442 = vmatpush.bf16.msra.mxu0 %v335
    %443 = vmatmul.bf16.gmra.mxu0 %v58
    %v444 = vpop.f32.mrf.mxu0
    %v445 = vadd.f32 %v432, %v444
    %v446 = vpop.f32.mrf.mxu0
    %447 = vdwg.mxu0
    %v448 = vtanh.pop %v445
    %v449 = vpack.c.bf16 %v448, %v448
    %v450 = vld [vmem:[%s3] sm:$0xf]
    %v451 = vld [vmem:[%s3 + $0x4] sm:$0xf]
    %v452 = vld [vmem:[%s3 + $0x8] sm:$0xf]
    %v453 = vld [vmem:[%s3 + $0xc] sm:$0xf]
    %v454 = vld [vmem:[%s3 + $0x10] sm:$0xf]
    %v455 = vld [vmem:[%s3 + $0x14] sm:$0xf]
    %v456 = vld [vmem:[%s3 + $0x18] sm:$0xf]
    %v457 = vld [vmem:[%s3 + $0x1c] sm:$0xf]
    %v458 = vld [vmem:[%s3 + $0x20] sm:$0xf]
    %v459 = vld [vmem:[%s3 + $0x24] sm:$0xf]
    %v460 = vld [vmem:[%s3 + $0x28] sm:$0xf]
    %v461 = vld [vmem:[%s3 + $0x2c] sm:$0xf]
    %v462 = vld [vmem:[%s3 + $0x30] sm:$0xf]
    %v463 = vld [vmem:[%s3 + $0x34] sm:$0xf]
    %v464 = vld [vmem:[%s3 + $0x38] sm:$0xf]
    %v465 = vld [vmem:[%s3 + $0x3c] sm:$0xf]
    %v466 = vld [vmem:[%s4] sm:$0x1]
    %v468 = vperm.slane %v466, 0
    %v486 = vunpack.c.l.b16 %v450
    %v487 = vunpack.c.l.b16 %v451
    %v488 = vunpack.c.l.b16 %v452
    %v489 = vunpack.c.l.b16 %v453
    %v490 = vunpack.c.l.b16 %v454
    %v491 = vunpack.c.l.b16 %v455
    %v492 = vunpack.c.l.b16 %v456
    %v493 = vunpack.c.l.b16 %v457
    %v494 = vunpack.c.l.b16 %v458
    %v495 = vunpack.c.l.b16 %v459
    %v496 = vunpack.c.l.b16 %v460
    %v497 = vunpack.c.l.b16 %v461
    %v498 = vunpack.c.l.b16 %v462
    %v499 = vunpack.c.l.b16 %v463
    %v500 = vunpack.c.l.b16 %v464
    %v501 = vunpack.c.l.b16 %v465
    %v502 = vpack.c.b16 %v487, %v486
    %v503 = vpack.c.b16 %v489, %v488
    %v504 = vpack.c.b16 %v491, %v490
    %v505 = vpack.c.b16 %v493, %v492
    %v506 = vpack.c.b16 %v495, %v494
    %v507 = vpack.c.b16 %v497, %v496
    %v508 = vpack.c.b16 %v499, %v498
    %v509 = vpack.c.b16 %v501, %v500
    %518 = vmatpush.bf16.msra.mxu0 %v509
    %519 = vmatpush.bf16.msra.mxu0 %v508
    %520 = vmatpush.bf16.msra.mxu0 %v507
    %521 = vmatpush.bf16.msra.mxu0 %v506
    %522 = vmatpush.bf16.msra.mxu0 %v505
    %523 = vmatpush.bf16.msra.mxu0 %v504
    %524 = vmatpush.bf16.msra.mxu0 %v503
    %525 = vmatpush.bf16.msra.mxu0 %v502
    %526 = vmatmul.bf16.gmra.mxu0 %v449
    %v527 = vpop.f32.mrf.mxu0
    %v528 = vadd.f32 %v468, %v527
    %v529 = vpop.f32.mrf.mxu0
    %530 = vdwg.mxu0
    %531 = vmax.xlane.f32.xlu0 %v528
    %v532 = vpop.xlane.xlu0 %531
    %v533 = vsub.f32 %v528, %v532
    %v534 = vmul.f32 %v533, 1.442695
    %v535 = vpow.pop %v534
    %536 = vadd.xlane.f32.xlu0 %v535
    %v537 = vpop.xlane.xlu0 %536
    %v538 = vlog2.pop %v537
    %v539 = vmul.f32 %v538, 0.6931472
    %v540 = vsub.f32 %v533, %v539
    %541 = vst [vmem:[#allocation2] sm:$0xff] %v540
    // Predicated region
    $region22: #{net_forward.1} parent=1 // pred_check
      _
    $region23: #{net_forward.1} parent=1 // pred_check_branch
      %543 = sbr.rel (0) target = $region25
    $region24: #{net_forward.1} parent=1 // pred_region
      %545 = vsyncadd [#allocation3], 0
      %s547 = sshll.u32 [#allocation2], 4
      %s548 = int_to_ptr.vmem [resolvable:$true] %s547
      %s549 = sshll.u32 %s5, 4
      %s550 = int_to_ptr.hbm [resolvable:$true] %s549
      %552 = dma.vmem_to_hbm [thread:$0]  %s548, 128, %s550, [#allocation3]
    $region25: #{net_forward.1} parent=1 // pred_fallthru
      _
    // Predicated region
    $region26: #{net_forward.1} parent=1 // pred_check
      _
    $region27: #{net_forward.1} parent=1 // pred_check_branch
      %554 = sbr.rel (0) target = $region29
    $region28: #{net_forward.1} parent=1 // pred_region
      %556 = dma.done [#allocation3], 128
    $region29: #{net_forward.1} parent=1 // pred_fallthru
      _
    %557 = vsyncpa [#allocation3], 1

</llo_original>
